<compile_context>
chip_gen: v6e
topology: v6e:2x2x1
jax: 0.10.0
libtpu: 0.0.40
codegen_flags: <defaults>
</compile_context>

<pallas_src>
import jax
import jax.numpy as jnp
from jax.experimental import pallas as pl
from jax.experimental.pallas import tpu as pltpu

BETA = 1.0
THRESHOLD = 20.0
OFFSET = 1.0 + 1e-06

# Widest lane-dense slab (last dim) that divides n; widest first for longer DMAs.
_LANE_CANDIDATES = (8192, 4096, 2048, 1024, 512, 256, 128)
_TILE_TARGET_BYTES = 4 << 20        # ~4 MiB per buffer (in + out, double-buffered -> ~16 MiB)
_VMEM_LIMIT_BYTES = 32 << 20        # above v5e's 16 MiB scoped default, within v7x's 64 MiB physical
_MIN_PALLAS_ELEMS = 2 * 1024 * 1024  # below this, fused XLA elementwise wins (overhead + fusion)


def _softplus_offset_math(x):
    """Pure elementwise math, shared by the kernel body and the pure-JAX fast path."""
    xf = x.astype(jnp.float32)
    bx = BETA * xf
    # min(bx, threshold) keeps the untaken branch finite (matches torch.nn.Softplus numerics)
    safe_bx = jnp.minimum(bx, THRESHOLD)
    sp = (1.0 / BETA) * jnp.log1p(jnp.exp(safe_bx))
    sp = jnp.where(bx > THRESHOLD, xf, sp)
    return (sp + OFFSET).astype(x.dtype)


def _softplus_offset_kernel(x_ref, o_ref):
    o_ref[...] = _softplus_offset_math(x_ref[...])


def _choose_tile_rows(rows, lane_w, itemsize, tile_target_bytes):
    """Pick a sublane-aligned row tile, preferring a divisor of rows (unmasked stores)."""
    row_mult = max(8, 32 // itemsize)          # 8 sublanes f32, 16 bf16, 32 int8
    if rows <= row_mult:
        return rows                            # single full-extent block along rows
    budget_rows = tile_target_bytes // (lane_w * itemsize)
    budget_rows = max(row_mult, (budget_rows // row_mult) * row_mult)
    budget_rows = min(budget_rows, rows)
    if budget_rows == rows:
        return rows
    # Snap down to a divisor of rows so every grid step is a full, unmasked block.
    t = budget_rows
    while t >= row_mult:
        if rows % t == 0:
            return t
        t -= row_mult
    return budget_rows                         # no divisor -> masked trailing block


def softplus_with_offset(x: jax.Array, *,
                         min_pallas_elems: int = _MIN_PALLAS_ELEMS,
                         tile_target_bytes: int = _TILE_TARGET_BYTES) -> jax.Array:
    n = x.size

    # Fast path: tiny tensors (the actual actor-critic std-head use case) or
    # lane-unfriendly sizes -> fused XLA elementwise (already HBM-optimal,
    # fuses with producers/consumers, no kernel-launch / per-step fixed cost).
    if n == 0 or n < min_pallas_elems or n % 128 != 0:
        return _softplus_offset_math(x)

    # Lane-dense 2-D slab via zero-copy reshape (no pad / slice HBM round-trips).
    # TODO(synk): if x can arrive with a non-default layout (e.g. fresh transpose),
    # this reshape materializes an HBM copy; detect that upstream and take the XLA path.
    lane_w = next(lw for lw in _LANE_CANDIDATES if n % lw == 0)
    rows = n // lane_w
    itemsize = x.dtype.itemsize

    tile_rows = _choose_tile_rows(rows, lane_w, itemsize, tile_target_bytes)
    grid = (pl.cdiv(rows, tile_rows),)

    x2d = x.reshape(rows, lane_w)

    out2d = pl.pallas_call(
        _softplus_offset_kernel,
        out_shape=jax.ShapeDtypeStruct((rows, lane_w), x.dtype),
        grid=grid,
        in_specs=[pl.BlockSpec((tile_rows, lane_w), lambda i: (i, 0))],
        out_specs=pl.BlockSpec((tile_rows, lane_w), lambda i: (i, 0)),
        compiler_params=pltpu.CompilerParams(
            # Embarrassingly parallel streaming op.
            # TODO(synk): on v7x, verify in xprof that this splits across both
            # TensorCores; if not, switch to pltpu.CORE_PARALLEL on this axis.
            dimension_semantics=("parallel",),
            vmem_limit_bytes=_VMEM_LIMIT_BYTES,
        ),
        cost_estimate=pl.CostEstimate(
            flops=4 * n,
            transcendentals=2 * n,               # exp + log1p per element
            bytes_accessed=2 * n * itemsize,     # one read + one write
        ),
    )(x2d)

    return out2d.reshape(x.shape)


if __name__ == "__main__":
    key = jax.random.PRNGKey(0)
    k1, k2, k3 = jax.random.split(key, 3)

    # 1) Tiny actor-critic-std-head-sized input -> pure-JAX fast path.
    x_small = jax.random.normal(k1, (2, 4, 16, 16), dtype=jnp.float32) * 10.0
    out_fast = softplus_with_offset(x_small)

    # 2) Same tensor forced through the Pallas path (single full (1, 2048) block).
    out_small = softplus_with_offset(x_small, min_pallas_elems=0)

    # 3) Tiled grid with divisor-snapped full blocks:
    #    n = 512*1024 -> lane_w=8192, rows=64, tile_rows=8 -> 8 uniform unmasked steps.
    x_tiled = jax.random.normal(k2, (512, 1024), dtype=jnp.float32) * 10.0
    out_tiled = softplus_with_offset(x_tiled, min_pallas_elems=0,
                                     tile_target_bytes=256 * 1024)

    # 4) Ragged row count (rows=17 at lane_w=8192) -> masked trailing block path.
    x_ragged = jax.random.normal(k3, (136, 1024), dtype=jnp.float32) * 10.0
    out_ragged = softplus_with_offset(x_ragged, min_pallas_elems=0,
                                      tile_target_bytes=256 * 1024)

    jax.block_until_ready((out_fast, out_small, out_tiled, out_ragged))

    ref_small = _softplus_offset_math(x_small)
    ref_tiled = _softplus_offset_math(x_tiled)
    ref_ragged = _softplus_offset_math(x_ragged)

    assert out_fast.shape == x_small.shape and out_fast.dtype == x_small.dtype
    assert jnp.allclose(out_fast, ref_small, atol=1e-5, rtol=1e-5), "fast path mismatch"
    assert out_small.shape == x_small.shape and out_small.dtype == x_small.dtype
    assert jnp.allclose(out_small, ref_small, atol=1e-5, rtol=1e-5), "pallas (small) mismatch"
    assert out_tiled.shape == x_tiled.shape and out_tiled.dtype == x_tiled.dtype
    assert jnp.allclose(out_tiled, ref_tiled, atol=1e-5, rtol=1e-5), "pallas (tiled) mismatch"
    assert out_ragged.shape == x_ragged.shape and out_ragged.dtype == x_ragged.dtype
    assert jnp.allclose(out_ragged, ref_ragged, atol=1e-5, rtol=1e-5), "pallas (ragged) mismatch"

    print("KERNEL_OK")
</pallas_src>

<mosaic_0001>
module attributes {stable_mosaic.version = 11 : i64} {
  func.func @_softplus_offset_kernel(%arg0: i32, %arg1: memref<1x2048xf32, #tpu.memory_space<vmem>>, %arg2: memref<1x2048xf32, #tpu.memory_space<vmem>>) attributes {dimension_semantics = [#tpu.dimension_semantics<parallel>], iteration_bounds = array<i64: 1>, scalar_prefetch = 0 : i64, scratch_operands = 0 : i64, tpu.core_type = #tpu.core_type<tc>, window_params = [{transform_indices = @transform_0, window_bounds = array<i64: 1, 2048>}, {transform_indices = @transform_1, window_bounds = array<i64: 1, 2048>}]} {
    %c0 = arith.constant 0 : index
    %c0_0 = arith.constant 0 : index
    %0 = vector.load %arg1[%c0, %c0_0] : memref<1x2048xf32, #tpu.memory_space<vmem>>, vector<1x2048xf32>
    %cst = arith.constant 1.000000e+00 : f32
    %1 = vector.broadcast %cst : f32 to vector<1x2048xf32>
    %2 = arith.mulf %1, %0 : vector<1x2048xf32>
    %cst_1 = arith.constant 2.000000e+01 : f32
    %3 = vector.broadcast %cst_1 : f32 to vector<1x2048xf32>
    %4 = arith.minimumf %2, %3 : vector<1x2048xf32>
    %5 = math.exp %4 : vector<1x2048xf32>
    %6 = math.log1p %5 : vector<1x2048xf32>
    %cst_2 = arith.constant 1.000000e+00 : f32
    %7 = vector.broadcast %cst_2 : f32 to vector<1x2048xf32>
    %8 = arith.mulf %7, %6 : vector<1x2048xf32>
    %cst_3 = arith.constant 2.000000e+01 : f32
    %9 = vector.broadcast %cst_3 : f32 to vector<1x2048xf32>
    %10 = arith.cmpf ogt, %2, %9 : vector<1x2048xf32>
    %11 = arith.select %10, %0, %8 : vector<1x2048xi1>, vector<1x2048xf32>
    %cst_4 = arith.constant 1.00000095 : f32
    %12 = vector.broadcast %cst_4 : f32 to vector<1x2048xf32>
    %13 = arith.addf %11, %12 : vector<1x2048xf32>
    %c0_5 = arith.constant 0 : index
    %c0_6 = arith.constant 0 : index
    %14 = vector.load %arg2[%c0_5, %c0_6] : memref<1x2048xf32, #tpu.memory_space<vmem>>, vector<1x2048xf32>
    tpu.vector_store %arg2[%c0_5, %c0_6], %13 {strides = array<i32>} : memref<1x2048xf32, #tpu.memory_space<vmem>>, vector<1x2048xf32>,
    return
  }
  func.func @transform_0(%arg0: i32) -> (i32, i32) {
    %c0_i32 = arith.constant 0 : i32
    %c0_i32_0 = arith.constant 0 : i32
    return %arg0, %c0_i32 : i32, i32
  }
  func.func @transform_1(%arg0: i32) -> (i32, i32) {
    %c0_i32 = arith.constant 0 : i32
    %c0_i32_0 = arith.constant 0 : i32
    return %arg0, %c0_i32 : i32, i32
  }
}

</mosaic_0001>

<llo_original>
// kernel: tpu_custom_call.1
$region0: #{tpu_custom_call.1}
  #allocation0 [shape = 'u32[]', space=smem, size = 0x4, offset = 0x4, fixed_abs, tag = 'smem constant byte address 0x4 - core index']
  #allocation1 [shape = 'u32[144,128]{1,0:T(1,128)}', space=vmem, size = 0x12000, scoped, tag = 'internal scratch']
  %s0 = inlined_call_operand.hbm [shape: f32[1,2048], index: 0, kind: input, shape index: {}]
  %s1 = inlined_call_operand.hbm [shape: f32[1,2048], index: 1, kind: output, shape index: {}]
  %s2 = sld [smem:[#allocation0]]
  $region18: #{tpu_custom_call.1} parent=0
    _
  %s4 = ssub.s32 1, %s2
  %s5 = scalar_select 0, %s4, %s2
  $region1: #{tpu_custom_call.1} parent=0
    #allocation2 [shape = 'u8[8192]{0}', space=vmem, size = 0x2000, scoped, tag = 'input window, operand 0, single buffered']
    #allocation3 [shape = 's32[1]{0}', space=sflag, size = 0x4, scoped, tag = 'scoped memory for tpu_custom_call.1']
    #allocation4 [shape = 's32[1]{0}', space=sflag, size = 0x4, scoped, tag = 'scoped memory for tpu_custom_call.1']
    #allocation5 [shape = 'u8[8192]{0}', space=vmem, size = 0x2000, scoped, tag = 'output window, operand 0, single buffered']
    %6 = vsyncpa [#allocation3], 0
    %7 = vsyncpa [#allocation4], 0
    // Predicated region
    $region2: #{tpu_custom_call.1} parent=1 // pred_check
      _
    $region3: #{tpu_custom_call.1} parent=1 // pred_check_branch
      %9 = sbr.rel (0) target = $region5
    $region4: #{tpu_custom_call.1} parent=1 // pred_region
      %s11 = ssub.s32 256, 256
      %12 = vsyncadd [#allocation3], %s11
      %s14 = sshll.u32 [#allocation2], 4
      %s15 = int_to_ptr.vmem [resolvable:$true] %s14
      %17 = dma.hbm_to_vmem [thread:$0]  %s0, 256, %s15, [#allocation3]
    $region5: #{tpu_custom_call.1} parent=1 // pred_fallthru
      _
    // Predicated region
    $region6: #{tpu_custom_call.1} parent=1 // pred_check
      _
    $region7: #{tpu_custom_call.1} parent=1 // pred_check_branch
      %19 = sbr.rel (0) target = $region9
    $region8: #{tpu_custom_call.1} parent=1 // pred_region
      %20 = dma.done [#allocation3], 256
    $region9: #{tpu_custom_call.1} parent=1 // pred_fallthru
      _
    %v21 = vld [vmem:[#allocation2] sm:$0xff]
    %v22 = vld [vmem:[#allocation2 + $0x8] sm:$0xff]
    %v23 = vmin.f32 %v21, 20.0
    %v24 = vmin.f32 %v22, 20.0
    %v25 = vmul.f32 %v23, 1.442695
    %v26 = vpow.pop %v25
    %v27 = vmul.f32 %v24, 1.442695
    %v28 = vpow.pop %v27
    %v29 = vadd.f32 %v26, 1.0
    %v30 = vlog2.pop %v29
    %v31 = vmul.f32 %v30, 0.6931472
    %v32 = vmul.f32 -0.5, %v26
    %v33 = vadd.f32 %v32, 1.0
    %v34 = vmul.f32 %v33, %v26
    %v35 = vand.u32 2147483647, %v26
    %vm36 = vcmp.lt.f32.partialorder %v35, 0.0004427343
    %v37 = vsel %vm36, %v34, %v31
    %v38 = vadd.f32 %v28, 1.0
    %v39 = vlog2.pop %v38
    %v40 = vmul.f32 %v39, 0.6931472
    %v41 = vmul.f32 -0.5, %v28
    %v42 = vadd.f32 %v41, 1.0
    %v43 = vmul.f32 %v42, %v28
    %v44 = vand.u32 2147483647, %v28
    %vm45 = vcmp.lt.f32.partialorder %v44, 0.0004427343
    %v46 = vsel %vm45, %v43, %v40
    %vm47 = vcmp.gt.f32.partialorder %v21, 20.0
    %vm48 = vcmp.gt.f32.partialorder %v22, 20.0
    %v49 = vsel %vm47, %v21, %v37
    %v50 = vsel %vm48, %v22, %v46
    %v51 = vadd.f32 %v49, 1.000001
    %v52 = vadd.f32 %v50, 1.000001
    %53 = vst [vmem:[#allocation5] sm:$0xff] %v51
    %54 = vst [vmem:[#allocation5 + $0x8] sm:$0xff] %v52
    // Predicated region
    $region10: #{tpu_custom_call.1} parent=1 // pred_check
      _
    $region11: #{tpu_custom_call.1} parent=1 // pred_check_branch
      %56 = sbr.rel (0) target = $region13
    $region12: #{tpu_custom_call.1} parent=1 // pred_region
      %s58 = ssub.s32 256, 256
      %59 = vsyncadd [#allocation4], %s58
      %s61 = sshll.u32 [#allocation5], 4
      %s62 = int_to_ptr.vmem [resolvable:$true] %s61
      %64 = dma.vmem_to_hbm [thread:$0]  %s62, 256, %s1, [#allocation4]
    $region13: #{tpu_custom_call.1} parent=1 // pred_fallthru
      _
    // Predicated region
    $region14: #{tpu_custom_call.1} parent=1 // pred_check
      _
    $region15: #{tpu_custom_call.1} parent=1 // pred_check_branch
      %66 = sbr.rel (0) target = $region17
    $region16: #{tpu_custom_call.1} parent=1 // pred_region
      %67 = dma.done [#allocation4], 256
    $region17: #{tpu_custom_call.1} parent=1 // pred_fallthru
      _
    %68 = vsyncpa [#allocation3], 1
    %69 = vsyncpa [#allocation4], 1

</llo_original>
